<compile_context>
chip_gen: v5e
topology: v5e:2x2
jax: 0.10.0
libtpu: 0.0.40
codegen_flags: <defaults>
</compile_context>

<pallas_src>
import jax
import jax.numpy as jnp
from jax import lax
from jax.experimental import pallas as pl
from jax.experimental.pallas import tpu as pltpu

# ----- problem constants (derived exactly like the PyTorch script) -----
embed_size = 2
sentences = ['i like Riemann', 'i love Pigcat', 'i miss Manman']
word_list = ' '.join(sentences).split(' ')
vocab = sorted(set(word_list))          # sorted for determinism
word2idx = {w: i for i, w in enumerate(vocab)}
n_class = len(vocab)                    # 7
n_hidden = 2
n_step = len(sentences[0].split()) - 1  # 2

# ----- TPU-friendly padded geometry -----
LANE = 128                     # lane-dense width for weight slabs / outputs
B_PAD = 8                      # f32 sublane granularity
D_IN = n_step * embed_size     # 4
BIAS_ROW = n_step * n_class    # 14: selector lane that injects b_1
K_PAD = 128                    # selector width padded to one full vreg of lanes


# ----- Pallas kernel: one-hot build + fused matmul + tanh + matmul -----
def nnlm_kernel(ids_ref, g_ref, u_ref, logits_ref):
    # Build the one-hot selector in-register (VPU iota/compare only).
    lane = lax.broadcasted_iota(jnp.int32, (B_PAD, K_PAD), 1)
    x_oh = (lane == BIAS_ROW).astype(jnp.float32)            # ones column -> b_1
    ids = ids_ref[...]                                        # (B_PAD, n_step) int32
    for s in range(n_step):
        tgt = ids[:, s:s + 1] + s * n_class                   # (B_PAD, 1)
        x_oh = x_oh + (lane == tgt).astype(jnp.float32)

    # Single fused MXU pass: lanes [0,128) -> x@W, lanes [128,256) -> x@H + b1.
    y = jnp.dot(x_oh, g_ref[...], preferred_element_type=jnp.float32)  # (B_PAD, 2*LANE)
    xw = y[:, :LANE]                    # lanes >= n_class are exactly 0
    hidden = jnp.tanh(y[:, LANE:])      # lanes >= n_hidden are tanh(0)=0

    # Second MXU pass + add; unmasked lane-dense store.
    logits_ref[...] = xw + jnp.dot(hidden, u_ref[...],
                                   preferred_element_type=jnp.float32)


def prepare_params(C, H, W, U, b1):
    """One-time parameter folding (embedding + biases fused into the weights)."""
    C = C.astype(jnp.float32)
    H = H.astype(jnp.float32)
    W = W.astype(jnp.float32)
    U = U.astype(jnp.float32)
    b1 = b1.astype(jnp.float32)

    # S maps the per-step one-hot selector to the concatenated embedding.
    S = jnp.zeros((n_step * n_class, D_IN), jnp.float32)
    for s in range(n_step):
        S = S.at[s * n_class:(s + 1) * n_class,
                 s * embed_size:(s + 1) * embed_size].set(C)

    G = jnp.zeros((K_PAD, 2 * LANE), jnp.float32)
    G = G.at[:n_step * n_class, :n_class].set(S @ W)               # x @ W branch
    G = G.at[:n_step * n_class, LANE:LANE + n_hidden].set(S @ H)   # x @ H branch
    G = G.at[BIAS_ROW, LANE:LANE + n_hidden].set(b1)               # fold b_1
    # NOTE: b_2 would fold into G[BIAS_ROW, :n_class] for free, but the given
    # PyTorch forward() never uses it, so it is intentionally left out.

    U_pad = jnp.zeros((LANE, LANE), jnp.float32)
    U_pad = U_pad.at[:n_hidden, :n_class].set(U)
    return G, U_pad


@jax.jit
def nnlm_forward(ids, G, U_pad):
    B = ids.shape[0]
    ids_pad = jnp.zeros((B_PAD, n_step), jnp.int32).at[:B].set(ids.astype(jnp.int32))
    logits_pad = pl.pallas_call(
        nnlm_kernel,
        out_shape=jax.ShapeDtypeStruct((B_PAD, LANE), jnp.float32),
        grid=(1,),
        in_specs=[
            pl.BlockSpec((B_PAD, n_step), lambda i: (0, 0)),       # token ids
            pl.BlockSpec((K_PAD, 2 * LANE), lambda i: (0, 0)),     # fused [W|H]+b1
            pl.BlockSpec((LANE, LANE), lambda i: (0, 0)),          # padded U
        ],
        out_specs=pl.BlockSpec((B_PAD, LANE), lambda i: (0, 0)),
        compiler_params=pltpu.CompilerParams(dimension_semantics=("arbitrary",)),
    )(ids_pad, G, U_pad)
    return logits_pad[:B, :n_class]


def nnlm_reference(X, C, H, W, U, b1):
    emb = C[X].reshape(X.shape[0], n_step * embed_size)
    hidden = jnp.tanh(jnp.dot(emb, H, precision='highest') + b1)
    return (jnp.dot(emb, W, precision='highest')
            + jnp.dot(hidden, U, precision='highest'))


if __name__ == "__main__":
    key = jax.random.PRNGKey(0)
    kC, kH, kW, kU, kb1, kb2 = jax.random.split(key, 6)

    # deterministic parameter init (matches the shapes in NNLM.__init__)
    C = jax.random.normal(kC, (n_class, embed_size), dtype=jnp.float32)
    H = jax.random.normal(kH, (n_step * embed_size, n_hidden), dtype=jnp.float32)
    W = jax.random.normal(kW, (n_step * embed_size, n_class), dtype=jnp.float32)
    U = jax.random.normal(kU, (n_hidden, n_class), dtype=jnp.float32)
    b1 = jax.random.normal(kb1, (n_hidden,), dtype=jnp.float32)
    b2 = jax.random.normal(kb2, (n_class,), dtype=jnp.float32)  # unused in forward

    # input_data exactly as the NNLM training script builds it:
    # first n_step words of each sentence as context token ids
    input_data = jnp.array(
        [[word2idx[w] for w in s.split()[:-1]] for s in sentences],
        dtype=jnp.int32,
    )  # shape (3, 2)

    # one-time parameter folding (embedding + weight fusion + padding)
    G, U_pad = prepare_params(C, H, W, U, b1)

    out = nnlm_forward(input_data, G, U_pad)
    out = jax.block_until_ready(out)

    ref = nnlm_reference(input_data, C, H, W, U, b1)
    assert out.shape == (len(sentences), n_class)
    assert jnp.allclose(out, ref, atol=2e-2, rtol=2e-2)

    # equivalent of `model(input_data).max(1, keepdim=False)[1]` (usage code,
    # not part of module.forward) — done in the wrapper per the perf review.
    preds = jnp.argmax(out, axis=1)
    assert jnp.array_equal(preds, jnp.argmax(ref, axis=1))

    print("KERNEL_OK")
</pallas_src>

<mosaic_0001>
module attributes {stable_mosaic.version = 11 : i64} {
  func.func @nnlm_kernel(%arg0: i32, %arg1: memref<8x2xi32, #tpu.memory_space<vmem>>, %arg2: memref<128x256xf32, #tpu.memory_space<vmem>>, %arg3: memref<128x128xf32, #tpu.memory_space<vmem>>, %arg4: memref<8x128xf32, #tpu.memory_space<vmem>>) attributes {dimension_semantics = [#tpu.dimension_semantics<arbitrary>], iteration_bounds = array<i64: 1>, scalar_prefetch = 0 : i64, scratch_operands = 0 : i64, tpu.core_type = #tpu.core_type<tc>, window_params = [{pipeline_mode = #tpu.pipeline_mode<synchronous>, transform_indices = @transform_0, window_bounds = array<i64: 8, 2>}, {pipeline_mode = #tpu.pipeline_mode<synchronous>, transform_indices = @transform_1, window_bounds = array<i64: 128, 256>}, {pipeline_mode = #tpu.pipeline_mode<synchronous>, transform_indices = @transform_2, window_bounds = array<i64: 128, 128>}, {pipeline_mode = #tpu.pipeline_mode<synchronous>, transform_indices = @transform_3, window_bounds = array<i64: 8, 128>}]} {
    %0 = tpu.iota {dimensions = array<i32: 1>} : vector<8x128xi32>
    %c14_i32 = arith.constant 14 : i32
    %1 = vector.broadcast %c14_i32 : i32 to vector<8x128xi32>
    %2 = arith.cmpi eq, %0, %1 : vector<8x128xi32>
    %3 = arith.extui %2 : vector<8x128xi1> to vector<8x128xi32>
    %4 = arith.sitofp %3 : vector<8x128xi32> to vector<8x128xf32>
    %c0 = arith.constant 0 : index
    %c0_0 = arith.constant 0 : index
    %5 = vector.load %arg1[%c0, %c0_0] : memref<8x2xi32, #tpu.memory_space<vmem>>, vector<8x2xi32>
    %6 = vector.extract_strided_slice %5 {offsets = [0, 0], sizes = [8, 1], strides = [1, 1]} : vector<8x2xi32> to vector<8x1xi32>
    %c0_i32 = arith.constant 0 : i32
    %7 = vector.broadcast %c0_i32 : i32 to vector<8x1xi32>
    %8 = arith.addi %6, %7 : vector<8x1xi32>
    %9 = vector.broadcast %8 : vector<8x1xi32> to vector<8x128xi32>
    %10 = arith.cmpi eq, %0, %9 : vector<8x128xi32>
    %11 = arith.extui %10 : vector<8x128xi1> to vector<8x128xi32>
    %12 = arith.sitofp %11 : vector<8x128xi32> to vector<8x128xf32>
    %13 = arith.addf %4, %12 : vector<8x128xf32>
    %14 = vector.extract_strided_slice %5 {offsets = [0, 1], sizes = [8, 1], strides = [1, 1]} : vector<8x2xi32> to vector<8x1xi32>
    %c7_i32 = arith.constant 7 : i32
    %15 = vector.broadcast %c7_i32 : i32 to vector<8x1xi32>
    %16 = arith.addi %14, %15 : vector<8x1xi32>
    %17 = vector.broadcast %16 : vector<8x1xi32> to vector<8x128xi32>
    %18 = arith.cmpi eq, %0, %17 : vector<8x128xi32>
    %19 = arith.extui %18 : vector<8x128xi1> to vector<8x128xi32>
    %20 = arith.sitofp %19 : vector<8x128xi32> to vector<8x128xf32>
    %21 = arith.addf %13, %20 : vector<8x128xf32>
    %c0_1 = arith.constant 0 : index
    %c0_2 = arith.constant 0 : index
    %22 = vector.load %arg2[%c0_1, %c0_2] : memref<128x256xf32, #tpu.memory_space<vmem>>, vector<128x256xf32>
    %cst = arith.constant dense<0.000000e+00> : vector<8x256xf32>
    %23 = tpu.matmul %21, %22, %cst {dimension_numbers = #tpu.dot_dimension_numbers<[1], [0], [0], [1], [0, 0, 1, 1], [], []>} : vector<8x128xf32>, vector<128x256xf32>, vector<8x256xf32> -> vector<8x256xf32>
    %24 = vector.extract_strided_slice %23 {offsets = [0, 0], sizes = [8, 128], strides = [1, 1]} : vector<8x256xf32> to vector<8x128xf32>
    %25 = vector.extract_strided_slice %23 {offsets = [0, 128], sizes = [8, 128], strides = [1, 1]} : vector<8x256xf32> to vector<8x128xf32>
    %26 = math.tanh %25 : vector<8x128xf32>
    %c0_3 = arith.constant 0 : index
    %c0_4 = arith.constant 0 : index
    %27 = vector.load %arg3[%c0_3, %c0_4] : memref<128x128xf32, #tpu.memory_space<vmem>>, vector<128x128xf32>
    %cst_5 = arith.constant dense<0.000000e+00> : vector<8x128xf32>
    %28 = tpu.matmul %26, %27, %cst_5 {dimension_numbers = #tpu.dot_dimension_numbers<[1], [0], [0], [1], [0, 0, 1, 1], [], []>} : vector<8x128xf32>, vector<128x128xf32>, vector<8x128xf32> -> vector<8x128xf32>
    %29 = arith.addf %24, %28 : vector<8x128xf32>
    %c0_6 = arith.constant 0 : index
    %c0_7 = arith.constant 0 : index
    %30 = vector.load %arg4[%c0_6, %c0_7] : memref<8x128xf32, #tpu.memory_space<vmem>>, vector<8x128xf32>
    tpu.vector_store %arg4[%c0_6, %c0_7], %29 {strides = array<i32>} : memref<8x128xf32, #tpu.memory_space<vmem>>, vector<8x128xf32>,
    return
  }
  func.func @transform_0(%arg0: i32) -> (i32, i32) {
    %c0_i32 = arith.constant 0 : i32
    %c0_i32_0 = arith.constant 0 : i32
    %c0_i32_1 = arith.constant 0 : i32
    return %c0_i32, %c0_i32_0 : i32, i32
  }
  func.func @transform_1(%arg0: i32) -> (i32, i32) {
    %c0_i32 = arith.constant 0 : i32
    %c0_i32_0 = arith.constant 0 : i32
    %c0_i32_1 = arith.constant 0 : i32
    return %c0_i32, %c0_i32_0 : i32, i32
  }
  func.func @transform_2(%arg0: i32) -> (i32, i32) {
    %c0_i32 = arith.constant 0 : i32
    %c0_i32_0 = arith.constant 0 : i32
    %c0_i32_1 = arith.constant 0 : i32
    return %c0_i32, %c0_i32_0 : i32, i32
  }
  func.func @transform_3(%arg0: i32) -> (i32, i32) {
    %c0_i32 = arith.constant 0 : i32
    %c0_i32_0 = arith.constant 0 : i32
    %c0_i32_1 = arith.constant 0 : i32
    return %c0_i32, %c0_i32_0 : i32, i32
  }
}

</mosaic_0001>

<llo_original>
// kernel: nnlm_forward.1
$region0: #{nnlm_forward.1}
  #allocation0 [shape = 'u32[]', space=smem, size = 0x4, offset = 0x4, fixed_abs, tag = 'smem constant byte address 0x4 - core index']
  #allocation1 [shape = 'u32[72,128]{1,0:T(1,128)}', space=vmem, size = 0x9000, scoped, tag = 'internal scratch']
  %s0 = inlined_call_operand.vmem [shape: s32[8,2], index: 0, kind: input, shape index: {}]
  %s1 = inlined_call_operand.hbm [shape: f32[128,256], index: 1, kind: input, shape index: {}]
  %s2 = inlined_call_operand.hbm [shape: f32[128,128], index: 2, kind: input, shape index: {}]
  %s3 = inlined_call_operand.vmem [shape: f32[8,128], index: 3, kind: output, shape index: {}]
  %s4 = sld [smem:[#allocation0]]
  $region30: #{nnlm_forward.1} parent=0
    _
  %s6 = ssub.s32 1, %s4
  %s7 = scalar_select 0, %s6, %s4
  $region1: #{nnlm_forward.1} parent=0
    #allocation2 [shape = 'u8[131072]{0}', space=vmem, size = 0x20000, scoped, tag = 'input window, operand 1, single buffered']
    #allocation3 [shape = 's32[1]{0}', space=sflag, size = 0x4, scoped, tag = 'scoped memory for nnlm_forward.1']
    #allocation4 [shape = 'u8[65536]{0}', space=vmem, size = 0x10000, scoped, tag = 'input window, operand 2, single buffered']
    #allocation5 [shape = 's32[1]{0}', space=sflag, size = 0x4, scoped, tag = 'scoped memory for nnlm_forward.1']
    %8 = vsyncpa [#allocation3], 0
    %9 = vsyncpa [#allocation5], 0
    // Predicated region
    $region2: #{nnlm_forward.1} parent=1 // pred_check
      _
    $region3: #{nnlm_forward.1} parent=1 // pred_check_branch
      %11 = sbr.rel (0) target = $region5
    $region4: #{nnlm_forward.1} parent=1 // pred_region
      _
    $region5: #{nnlm_forward.1} parent=1 // pred_fallthru
      _
    // Predicated region
    $region6: #{nnlm_forward.1} parent=1 // pred_check
      _
    $region7: #{nnlm_forward.1} parent=1 // pred_check_branch
      %13 = sbr.rel (0) target = $region9
    $region8: #{nnlm_forward.1} parent=1 // pred_region
      %15 = vsyncadd [#allocation3], 0
      %s16 = sshll.u32 %s1, 4
      %s17 = int_to_ptr.hbm [resolvable:$true] %s16
      %s18 = sshll.u32 [#allocation2], 4
      %s19 = int_to_ptr.vmem [resolvable:$true] %s18
      %24 = dma.hbm_to_vmem [thread:$0]  %s17, 4096, %s19, [#allocation3], 256, 256, 16
    $region9: #{nnlm_forward.1} parent=1 // pred_fallthru
      _
    // Predicated region
    $region10: #{nnlm_forward.1} parent=1 // pred_check
      _
    $region11: #{nnlm_forward.1} parent=1 // pred_check_branch
      %26 = sbr.rel (0) target = $region13
    $region12: #{nnlm_forward.1} parent=1 // pred_region
      %28 = vsyncadd [#allocation5], 0
      %s29 = sshll.u32 %s2, 4
      %s30 = int_to_ptr.hbm [resolvable:$true] %s29
      %s31 = sshll.u32 [#allocation4], 4
      %s32 = int_to_ptr.vmem [resolvable:$true] %s31
      %37 = dma.hbm_to_vmem [thread:$0]  %s30, 2048, %s32, [#allocation5], 128, 128, 8
    $region13: #{nnlm_forward.1} parent=1 // pred_fallthru
      _
    // Predicated region
    $region14: #{nnlm_forward.1} parent=1 // pred_check
      _
    $region15: #{nnlm_forward.1} parent=1 // pred_check_branch
      %39 = sbr.rel (0) target = $region17
    $region16: #{nnlm_forward.1} parent=1 // pred_region
      %41 = dma.done [#allocation3], 4096
    $region17: #{nnlm_forward.1} parent=1 // pred_fallthru
      _
    // Predicated region
    $region18: #{nnlm_forward.1} parent=1 // pred_check
      _
    $region19: #{nnlm_forward.1} parent=1 // pred_check_branch
      %43 = sbr.rel (0) target = $region21
    $region20: #{nnlm_forward.1} parent=1 // pred_region
      %45 = dma.done [#allocation5], 2048
    $region21: #{nnlm_forward.1} parent=1 // pred_fallthru
      _
    %v46 = vlaneseq
    %v47 = vand.u32 %v46, 127
    %vm48 = vcmp.eq.s32.totalorder %v47, 14
    %v49 = vsel %vm48, 1, 0
    %v50 = vcvt.s32.f32 %v49
    %v51 = vld [vmem:[%s0] sm:$0xff]
    %52 = vset.pattern.permute.xlu0 0
    %53 = vperm.xlu0 %52, %v51
    %v54 = vpop.permute.xlu0 %53
    %vm55 = vcmp.eq.s32.totalorder %v47, %v54
    %v56 = vsel %vm55, 1, 0
    %v57 = vcvt.s32.f32 %v56
    %v58 = vadd.f32 %v50, %v57
    %v59 = vadd.s32 %v51, 7
    %60 = vset.pattern.permute.xlu0 1
    %61 = vperm.xlu0 %60, %v59
    %v62 = vpop.permute.xlu0 %61
    %vm63 = vcmp.eq.s32.totalorder %v47, %v62
    %v64 = vsel %vm63, 1, 0
    %v65 = vcvt.s32.f32 %v64
    %v66 = vadd.f32 %v58, %v65
    %v67 = vld [vmem:[#allocation2] sm:$0xff]
    %v68 = vld [vmem:[#allocation2 + $0x8] sm:$0xff]
    %v69 = vld [vmem:[#allocation2 + $0x10] sm:$0xff]
    %v70 = vld [vmem:[#allocation2 + $0x18] sm:$0xff]
    %v71 = vld [vmem:[#allocation2 + $0x20] sm:$0xff]
    %v72 = vld [vmem:[#allocation2 + $0x28] sm:$0xff]
    %v73 = vld [vmem:[#allocation2 + $0x30] sm:$0xff]
    %v74 = vld [vmem:[#allocation2 + $0x38] sm:$0xff]
    %v75 = vld [vmem:[#allocation2 + $0x40] sm:$0xff]
    %v76 = vld [vmem:[#allocation2 + $0x48] sm:$0xff]
    %v77 = vld [vmem:[#allocation2 + $0x50] sm:$0xff]
    %v78 = vld [vmem:[#allocation2 + $0x58] sm:$0xff]
    %v79 = vld [vmem:[#allocation2 + $0x60] sm:$0xff]
    %v80 = vld [vmem:[#allocation2 + $0x68] sm:$0xff]
    %v81 = vld [vmem:[#allocation2 + $0x70] sm:$0xff]
    %v82 = vld [vmem:[#allocation2 + $0x78] sm:$0xff]
    %v83 = vld [vmem:[#allocation2 + $0x80] sm:$0xff]
    %v84 = vld [vmem:[#allocation2 + $0x88] sm:$0xff]
    %v85 = vld [vmem:[#allocation2 + $0x90] sm:$0xff]
    %v86 = vld [vmem:[#allocation2 + $0x98] sm:$0xff]
    %v87 = vld [vmem:[#allocation2 + $0xa0] sm:$0xff]
    %v88 = vld [vmem:[#allocation2 + $0xa8] sm:$0xff]
    %v89 = vld [vmem:[#allocation2 + $0xb0] sm:$0xff]
    %v90 = vld [vmem:[#allocation2 + $0xb8] sm:$0xff]
    %v91 = vld [vmem:[#allocation2 + $0xc0] sm:$0xff]
    %v92 = vld [vmem:[#allocation2 + $0xc8] sm:$0xff]
    %v93 = vld [vmem:[#allocation2 + $0xd0] sm:$0xff]
    %v94 = vld [vmem:[#allocation2 + $0xd8] sm:$0xff]
    %v95 = vld [vmem:[#allocation2 + $0xe0] sm:$0xff]
    %v96 = vld [vmem:[#allocation2 + $0xe8] sm:$0xff]
    %v97 = vld [vmem:[#allocation2 + $0xf0] sm:$0xff]
    %v98 = vld [vmem:[#allocation2 + $0xf8] sm:$0xff]
    %99 = vmatpush.msra.mxu0 %v97
    %100 = vmatpush.msra.mxu0 %v95
    %101 = vmatpush.msra.mxu0 %v93
    %102 = vmatpush.msra.mxu0 %v91
    %103 = vmatpush.msra.mxu0 %v89
    %104 = vmatpush.msra.mxu0 %v87
    %105 = vmatpush.msra.mxu0 %v85
    %106 = vmatpush.msra.mxu0 %v83
    %107 = vmatpush.msra.mxu0 %v81
    %108 = vmatpush.msra.mxu0 %v79
    %109 = vmatpush.msra.mxu0 %v77
    %110 = vmatpush.msra.mxu0 %v75
    %111 = vmatpush.msra.mxu0 %v73
    %112 = vmatpush.msra.mxu0 %v71
    %113 = vmatpush.msra.mxu0 %v69
    %114 = vmatpush.msra.mxu0 %v67
    %115 = vmatmul.f32.gmra.mxu0 %v66
    %v116 = vpop.f32.mrf.mxu0
    %v117 = vadd.f32 0.0, %v116
    %118 = vdwg.mxu0
    %119 = vmatpush.msra.mxu0 %v98
    %120 = vmatpush.msra.mxu0 %v96
    %121 = vmatpush.msra.mxu0 %v94
    %122 = vmatpush.msra.mxu0 %v92
    %123 = vmatpush.msra.mxu0 %v90
    %124 = vmatpush.msra.mxu0 %v88
    %125 = vmatpush.msra.mxu0 %v86
    %126 = vmatpush.msra.mxu0 %v84
    %127 = vmatpush.msra.mxu0 %v82
    %128 = vmatpush.msra.mxu0 %v80
    %129 = vmatpush.msra.mxu0 %v78
    %130 = vmatpush.msra.mxu0 %v76
    %131 = vmatpush.msra.mxu0 %v74
    %132 = vmatpush.msra.mxu0 %v72
    %133 = vmatpush.msra.mxu0 %v70
    %134 = vmatpush.msra.mxu0 %v68
    %135 = vmatmul.f32.gmra.mxu0 %v66
    %v136 = vpop.f32.mrf.mxu0
    %v137 = vadd.f32 0.0, %v136
    %138 = vdwg.mxu0
    %v139 = vtanh.pop %v137
    %v140 = vld [vmem:[#allocation4] sm:$0xff]
    %v141 = vld [vmem:[#allocation4 + $0x8] sm:$0xff]
    %v142 = vld [vmem:[#allocation4 + $0x10] sm:$0xff]
    %v143 = vld [vmem:[#allocation4 + $0x18] sm:$0xff]
    %v144 = vld [vmem:[#allocation4 + $0x20] sm:$0xff]
    %v145 = vld [vmem:[#allocation4 + $0x28] sm:$0xff]
    %v146 = vld [vmem:[#allocation4 + $0x30] sm:$0xff]
    %v147 = vld [vmem:[#allocation4 + $0x38] sm:$0xff]
    %v148 = vld [vmem:[#allocation4 + $0x40] sm:$0xff]
    %v149 = vld [vmem:[#allocation4 + $0x48] sm:$0xff]
    %v150 = vld [vmem:[#allocation4 + $0x50] sm:$0xff]
    %v151 = vld [vmem:[#allocation4 + $0x58] sm:$0xff]
    %v152 = vld [vmem:[#allocation4 + $0x60] sm:$0xff]
    %v153 = vld [vmem:[#allocation4 + $0x68] sm:$0xff]
    %v154 = vld [vmem:[#allocation4 + $0x70] sm:$0xff]
    %v155 = vld [vmem:[#allocation4 + $0x78] sm:$0xff]
    %156 = vmatpush.msra.mxu0 %v155
    %157 = vmatpush.msra.mxu0 %v154
    %158 = vmatpush.msra.mxu0 %v153
    %159 = vmatpush.msra.mxu0 %v152
    %160 = vmatpush.msra.mxu0 %v151
    %161 = vmatpush.msra.mxu0 %v150
    %162 = vmatpush.msra.mxu0 %v149
    %163 = vmatpush.msra.mxu0 %v148
    %164 = vmatpush.msra.mxu0 %v147
    %165 = vmatpush.msra.mxu0 %v146
    %166 = vmatpush.msra.mxu0 %v145
    %167 = vmatpush.msra.mxu0 %v144
    %168 = vmatpush.msra.mxu0 %v143
    %169 = vmatpush.msra.mxu0 %v142
    %170 = vmatpush.msra.mxu0 %v141
    %171 = vmatpush.msra.mxu0 %v140
    %172 = vmatmul.f32.gmra.mxu0 %v139
    %v173 = vpop.f32.mrf.mxu0
    %v174 = vadd.f32 0.0, %v173
    %175 = vdwg.mxu0
    %v176 = vadd.f32 %v117, %v174
    %177 = vst [vmem:[%s3] sm:$0xff] %v176
    // Predicated region
    $region22: #{nnlm_forward.1} parent=1 // pred_check
      _
    $region23: #{nnlm_forward.1} parent=1 // pred_check_branch
      %179 = sbr.rel (0) target = $region25
    $region24: #{nnlm_forward.1} parent=1 // pred_region
      _
    $region25: #{nnlm_forward.1} parent=1 // pred_fallthru
      _
    // Predicated region
    $region26: #{nnlm_forward.1} parent=1 // pred_check
      _
    $region27: #{nnlm_forward.1} parent=1 // pred_check_branch
      %181 = sbr.rel (0) target = $region29
    $region28: #{nnlm_forward.1} parent=1 // pred_region
      _
    $region29: #{nnlm_forward.1} parent=1 // pred_fallthru
      _
    %182 = vsyncpa [#allocation3], 1
    %183 = vsyncpa [#allocation5], 1

</llo_original>
